<compile_context>
chip_gen: v7x
topology: tpu7x:2x2x1
jax: 0.10.0
libtpu: 0.0.40
codegen_flags: <defaults>
</compile_context>

<pallas_src>
import functools

import jax
import jax.numpy as jnp
from jax.experimental import pallas as pl
from jax.experimental.pallas import tpu as pltpu

LEAKY_SLOPE = 0.2
PIXELNORM_EPS = 1e-8


# ---------------------------------------------------------------------------
# In-kernel bodies
# ---------------------------------------------------------------------------
def _phase_activations(x_ref, wc_ref, wp_ref, wn_ref, b_ref, l_in):
    """Fused Upsample(x2) + Conv1d(k=3, pad=1) + bias + LeakyReLU + PixelNorm
    for BOTH polyphases (even / odd output samples) of one batch tile.

    x_ref  : (C_in, N)        batch-folded input tile (N = bt * l_in), matmul dtype
    wc_ref : (2*C_out, C_in)  stacked x_cur weights  [W1+W2 ; W0+W1]
    wp_ref : (C_out, C_in)    even-phase x_prev weight (W0)
    wn_ref : (C_out, C_in)    odd-phase  x_next weight (W2)
    b_ref  : (C_out, 1)       f32 conv bias
    returns (even, odd) f32 normalized activations, each (C_out, N).
    """
    xt = x_ref[...]                                    # (C_in, N)
    n = xt.shape[1]
    c_out = wp_ref.shape[0]

    # Single (1, N) boundary mask shared by both phases / both shifted slabs.
    pos = jax.lax.broadcasted_iota(jnp.int32, (1, n), 1) % l_in

    # Lane shifts on the XLU; wrap-around lanes land on batch-element boundaries
    # and are masked to zero (== the conv's zero padding).  Rolls/masks run in
    # f32 (portable across generations); slabs drop to the matmul dtype only
    # right before the MXU.
    x32 = xt.astype(jnp.float32)
    x_prev = jnp.where(pos == 0, 0.0, pltpu.roll(x32, shift=1, axis=1))
    x_next = jnp.where(pos == l_in - 1, 0.0, pltpu.roll(x32, shift=n - 1, axis=1))
    x_prev = x_prev.astype(xt.dtype)
    x_next = x_next.astype(xt.dtype)

    # Three accumulating MXU matmuls; no im2col concatenate, no ones row.
    acc_c = jnp.dot(wc_ref[...], xt, preferred_element_type=jnp.float32)   # (2*C_out, N)
    even = acc_c[:c_out] + jnp.dot(wp_ref[...], x_prev,
                                   preferred_element_type=jnp.float32)
    odd = acc_c[c_out:] + jnp.dot(wn_ref[...], x_next,
                                  preferred_element_type=jnp.float32)

    # f32 bias + LeakyReLU(0.2) + PixelNorm over channels, per phase.
    bias = b_ref[...]
    even = even + bias
    odd = odd + bias
    even = jnp.where(even >= 0, even, LEAKY_SLOPE * even)
    odd = jnp.where(odd >= 0, odd, LEAKY_SLOPE * odd)
    even = even * jax.lax.rsqrt(jnp.mean(even * even, axis=0, keepdims=True)
                                + PIXELNORM_EPS)
    odd = odd * jax.lax.rsqrt(jnp.mean(odd * odd, axis=0, keepdims=True)
                              + PIXELNORM_EPS)
    return even, odd


def _intermediate_kernel(x_ref, wc_ref, wp_ref, wn_ref, b_ref, o_ref, *, l_in):
    even, odd = _phase_activations(x_ref, wc_ref, wp_ref, wn_ref, b_ref, l_in)
    o_ref[0] = even.astype(o_ref.dtype)
    o_ref[1] = odd.astype(o_ref.dtype)


def _intermediate_last_kernel(x_ref, wc_ref, wp_ref, wn_ref, b_ref, wo_ref, ob_ref,
                              o_ref, *, l_in):
    """Intermediate sequence + fused 1x1 out-projection (last=True path)."""
    even, odd = _phase_activations(x_ref, wc_ref, wp_ref, wn_ref, b_ref, l_in)
    wo = wo_ref[...]                                   # (1, C_out) matmul dtype
    if wo.dtype != jnp.float32:
        even_m, odd_m = even.astype(wo.dtype), odd.astype(wo.dtype)
    else:
        even_m, odd_m = even, odd
    ob = ob_ref[...]                                   # (1, 1) f32
    y_even = jnp.dot(wo, even_m, preferred_element_type=jnp.float32) + ob
    y_odd = jnp.dot(wo, odd_m, preferred_element_type=jnp.float32) + ob
    o_ref[...] = jnp.concatenate([y_even, y_odd], axis=0).astype(o_ref.dtype)


def _out_kernel(h_ref, wo_ref, ob_ref, o_ref):
    """Standalone 1x1 Conv1d (C -> 1) on a batch-folded (C, N) activation tile."""
    y = jnp.dot(wo_ref[...], h_ref[...], preferred_element_type=jnp.float32)
    o_ref[...] = (y + ob_ref[...]).astype(o_ref.dtype)


# ---------------------------------------------------------------------------
# Wrapper-side layout / weight helpers
# ---------------------------------------------------------------------------
def _fold(x, dtype=None):
    """(B, C, L) -> (C, B*L): batch folded into the lane dimension."""
    b, c, l = x.shape
    xf = jnp.transpose(x, (1, 0, 2)).reshape(c, b * l)
    if dtype is not None and xf.dtype != jnp.dtype(dtype):
        xf = xf.astype(dtype)
    return xf


def _unfold_phases(y, batch, l_in):
    """(2, C, B*L_in) phase-major -> (B, C, 2*L_in) with even/odd interleaved."""
    p, c, _ = y.shape
    y = y.reshape(p, c, batch, l_in)
    return jnp.transpose(y, (2, 1, 3, 0)).reshape(batch, c, 2 * l_in)


def _unfold_last(y, batch, l_in):
    """(2, B*L_in) phase-major -> (B, 1, 2*L_in) with even/odd interleaved."""
    y = y.reshape(2, batch, l_in)
    return jnp.transpose(y, (1, 2, 0)).reshape(batch, 1, 2 * l_in)


def _stacked_conv_weights(conv_w, conv_b, matmul_dtype):
    """Conv1d weight (C_out, C_in, 3) + bias -> phase-stacked polyphase weights.

      even output 2i   = W0 @ x[i-1] + (W1+W2) @ x[i]   + b
      odd  output 2i+1 = (W0+W1) @ x[i] + W2 @ x[i+1]   + b
    """
    c_out, c_in, k = conv_w.shape
    assert k == 3
    w0, w1, w2 = conv_w[..., 0], conv_w[..., 1], conv_w[..., 2]
    md = jnp.dtype(matmul_dtype) if matmul_dtype is not None else conv_w.dtype
    wc = jnp.concatenate([w1 + w2, w0 + w1], axis=0).astype(md)   # (2*C_out, C_in)
    wp = w0.astype(md)                                            # (C_out, C_in)
    wn = w2.astype(md)                                            # (C_out, C_in)
    bias = conv_b.reshape(c_out, 1).astype(jnp.float32)
    return wc, wp, wn, bias


def _vmem_budget_and_limit():
    """Generation-aware per-step working-set budget and scoped-VMEM limit."""
    cap = 64 << 20                  # conservative fallback (v7x has 64 MiB VMEM)
    try:
        cap = int(pltpu.get_tpu_info().vmem_capacity_bytes)
    except Exception:
        pass
    limit = int(min((3 * cap) // 4, 96 << 20))
    budget = int(min(cap // 3, 40 << 20))
    return budget, limit


def _choose_batch_tile(batch, l_in, bytes_per_lane, budget_bytes):
    """Largest divisor of `batch` whose folded working set fits the VMEM budget.
    Prefers tiles giving >= 2 grid steps (pipelining + v7x dual-TC sharding);
    partial tiles must give lane extents that are multiples of 128."""
    def ok(bt):
        lanes = bt * l_in
        return ((bt == batch or lanes % 128 == 0)
                and lanes * bytes_per_lane <= budget_bytes)
    divisors = [d for d in range(batch, 0, -1) if batch % d == 0]
    split = [d for d in divisors if d < batch and ok(d)]
    if split:
        return split[0]
    full = [d for d in divisors if ok(d)]
    return full[0] if full else batch


# ---------------------------------------------------------------------------
# pallas_call factories
# ---------------------------------------------------------------------------
def make_intermediate_sequence(conv_w, conv_b, *, matmul_dtype=jnp.bfloat16):
    c_out, c_in, _ = conv_w.shape
    wc, wp, wn, bias = _stacked_conv_weights(conv_w, conv_b, matmul_dtype)
    budget, vmem_limit = _vmem_budget_and_limit()
    in_bytes = jnp.dtype(wc.dtype).itemsize

    def apply(x):
        batch, ci, l_in = x.shape
        assert ci == c_in
        out_dtype = x.dtype
        # rough VMEM bytes per folded lane: x double-buffer + shifted slabs
        # + f32 phase accumulators + double-buffered phase outputs.
        bpl = (in_bytes * 5 * c_in + 16 * c_out
               + 4 * c_out * jnp.dtype(out_dtype).itemsize)
        bt = _choose_batch_tile(batch, l_in, bpl, budget)
        n_bt, nt = batch // bt, bt * l_in
        xf = _fold(x, wc.dtype)                              # (C_in, B*L_in)
        kernel = functools.partial(_intermediate_kernel, l_in=l_in)
        y = pl.pallas_call(
            kernel,
            out_shape=jax.ShapeDtypeStruct((2, c_out, batch * l_in), out_dtype),
            grid_spec=pltpu.PrefetchScalarGridSpec(
                num_scalar_prefetch=0,
                grid=(n_bt,),
                in_specs=[
                    pl.BlockSpec((c_in, nt), lambda bi: (0, bi)),
                    pl.BlockSpec((2 * c_out, c_in), lambda bi: (0, 0)),
                    pl.BlockSpec((c_out, c_in), lambda bi: (0, 0)),
                    pl.BlockSpec((c_out, c_in), lambda bi: (0, 0)),
                    pl.BlockSpec((c_out, 1), lambda bi: (0, 0)),
                ],
                out_specs=pl.BlockSpec((2, c_out, nt), lambda bi: (0, 0, bi)),
            ),
            compiler_params=pltpu.CompilerParams(
                dimension_semantics=("parallel",),
                vmem_limit_bytes=vmem_limit),
        )(xf, wc, wp, wn, bias)
        return _unfold_phases(y, batch, l_in)                # (B, C_out, 2*L_in)

    return apply


def make_out_sequence(out_w, out_b, *, matmul_dtype=jnp.bfloat16):
    md = jnp.dtype(matmul_dtype) if matmul_dtype is not None else out_w.dtype
    wo = out_w.reshape(1, -1).astype(md)                     # (1, C)
    c = wo.shape[1]
    ob = out_b.reshape(1, 1).astype(jnp.float32)
    budget, vmem_limit = _vmem_budget_and_limit()
    in_bytes = jnp.dtype(md).itemsize

    def apply(h):
        batch, ci, length = h.shape
        assert ci == c
        out_dtype = h.dtype
        bpl = in_bytes * 3 * c + 16
        bt = _choose_batch_tile(batch, length, bpl, budget)
        n_bt, nt = batch // bt, bt * length
        hf = _fold(h, md)                                    # (C, B*length)
        y = pl.pallas_call(
            _out_kernel,
            out_shape=jax.ShapeDtypeStruct((1, batch * length), out_dtype),
            grid_spec=pltpu.PrefetchScalarGridSpec(
                num_scalar_prefetch=0,
                grid=(n_bt,),
                in_specs=[
                    pl.BlockSpec((c, nt), lambda bi: (0, bi)),
                    pl.BlockSpec((1, c), lambda bi: (0, 0)),
                    pl.BlockSpec((1, 1), lambda bi: (0, 0)),
                ],
                out_specs=pl.BlockSpec((1, nt), lambda bi: (0, bi)),
            ),
            compiler_params=pltpu.CompilerParams(
                dimension_semantics=("parallel",),
                vmem_limit_bytes=vmem_limit),
        )(hf, wo, ob)
        # (1, B*L) -> (B, 1, L): metadata reshape only.
        return y.reshape(batch, length)[:, None, :]

    return apply


def make_fused_last_sequence(conv_w, conv_b, out_w, out_b, *,
                             matmul_dtype=jnp.bfloat16):
    c_out, c_in, _ = conv_w.shape
    wc, wp, wn, bias = _stacked_conv_weights(conv_w, conv_b, matmul_dtype)
    md = wc.dtype
    wo = out_w.reshape(1, c_out).astype(md)
    ob = out_b.reshape(1, 1).astype(jnp.float32)
    budget, vmem_limit = _vmem_budget_and_limit()
    in_bytes = jnp.dtype(md).itemsize

    def apply(x):
        batch, ci, l_in = x.shape
        assert ci == c_in
        out_dtype = x.dtype
        bpl = in_bytes * 5 * c_in + 16 * c_out + 16
        bt = _choose_batch_tile(batch, l_in, bpl, budget)
        n_bt, nt = batch // bt, bt * l_in
        xf = _fold(x, md)
        kernel = functools.partial(_intermediate_last_kernel, l_in=l_in)
        y = pl.pallas_call(
            kernel,
            out_shape=jax.ShapeDtypeStruct((2, batch * l_in), out_dtype),
            grid_spec=pltpu.PrefetchScalarGridSpec(
                num_scalar_prefetch=0,
                grid=(n_bt,),
                in_specs=[
                    pl.BlockSpec((c_in, nt), lambda bi: (0, bi)),
                    pl.BlockSpec((2 * c_out, c_in), lambda bi: (0, 0)),
                    pl.BlockSpec((c_out, c_in), lambda bi: (0, 0)),
                    pl.BlockSpec((c_out, c_in), lambda bi: (0, 0)),
                    pl.BlockSpec((c_out, 1), lambda bi: (0, 0)),
                    pl.BlockSpec((1, c_out), lambda bi: (0, 0)),
                    pl.BlockSpec((1, 1), lambda bi: (0, 0)),
                ],
                out_specs=pl.BlockSpec((2, nt), lambda bi: (0, bi)),
            ),
            compiler_params=pltpu.CompilerParams(
                dimension_semantics=("parallel",),
                vmem_limit_bytes=vmem_limit),
        )(xf, wc, wp, wn, bias, wo, ob)
        return _unfold_last(y, batch, l_in)                  # (B, 1, 2*L_in)

    return apply


# ---------------------------------------------------------------------------
# Module mirror
# ---------------------------------------------------------------------------
class ProgressiveGeneratorBlock:
    """Mirror of the PyTorch container's forward(input, last) semantics."""

    def __init__(self, intermediate_sequence, out_sequence, fade_sequence,
                 fused_last_sequence=None):
        self.intermediate_sequence = intermediate_sequence
        self.out_sequence = out_sequence
        # fade_sequence is only used externally during progressive fading; it is
        # never invoked by forward(), so it is kept only for interface parity.
        self.fade_sequence = fade_sequence
        self._fused_last_sequence = fused_last_sequence

    def __call__(self, x, last=False):
        if last:
            if self._fused_last_sequence is not None:
                # Fused path: the (B, C_out, 2L) intermediate never touches HBM.
                return self._fused_last_sequence(x)
            return self.out_sequence(self.intermediate_sequence(x))
        return self.intermediate_sequence(x)


def make_progressive_generator_block(conv_w, conv_b, out_w, out_b, *,
                                     matmul_dtype=jnp.bfloat16):
    return ProgressiveGeneratorBlock(
        intermediate_sequence=make_intermediate_sequence(
            conv_w, conv_b, matmul_dtype=matmul_dtype),
        out_sequence=make_out_sequence(out_w, out_b, matmul_dtype=matmul_dtype),
        # TODO(synk): fade_sequence is external to forward(); not lowered.
        fade_sequence=None,
        fused_last_sequence=make_fused_last_sequence(
            conv_w, conv_b, out_w, out_b, matmul_dtype=matmul_dtype),
    )


# ---------------------------------------------------------------------------
# Pure-JAX reference (for the self-check in __main__)
# ---------------------------------------------------------------------------
def _reference_intermediate(x, conv_w, conv_b):
    hp = jax.lax.Precision.HIGHEST
    x_up = jnp.repeat(x, 2, axis=2)
    x_pad = jnp.pad(x_up, ((0, 0), (0, 0), (1, 1)))
    length = x_up.shape[2]
    y = conv_b[None, :, None]
    for k in range(3):
        y = y + jnp.einsum('oi,bil->bol', conv_w[:, :, k],
                           x_pad[:, :, k:k + length], precision=hp)
    y = jnp.where(y >= 0, y, LEAKY_SLOPE * y)
    return y * jax.lax.rsqrt(jnp.mean(y * y, axis=1, keepdims=True) + PIXELNORM_EPS)


def _reference_out(h, out_w, out_b):
    hp = jax.lax.Precision.HIGHEST
    return jnp.einsum('oc,bcl->bol', out_w, h, precision=hp) + out_b[None, :, None]


# ---------------------------------------------------------------------------
# Smoke test
# ---------------------------------------------------------------------------
if __name__ == "__main__":
    B, C_IN, C_OUT, L_IN = 2, 8, 16, 64

    key = jax.random.PRNGKey(0)
    k_w1, k_b1, k_w2, k_b2, k_x = jax.random.split(key, 5)

    # calculate_gain('leaky_relu', 0.2) = sqrt(2 / (1 + 0.2^2)); He-style init.
    gain = (2.0 / (1.0 + LEAKY_SLOPE ** 2)) ** 0.5
    std1 = gain / (C_IN * 3) ** 0.5
    conv_w = std1 * jax.random.normal(k_w1, (C_OUT, C_IN, 3), jnp.float32)
    conv_b = 0.01 * jax.random.normal(k_b1, (C_OUT,), jnp.float32)
    std2 = 1.0 / C_OUT ** 0.5
    out_w = std2 * jax.random.normal(k_w2, (1, C_OUT), jnp.float32)
    out_b = 0.01 * jax.random.normal(k_b2, (1,), jnp.float32)

    x = jax.random.normal(k_x, (B, C_IN, L_IN), jnp.float32)

    ref_mid = _reference_intermediate(x, conv_w, conv_b)
    ref_last = _reference_out(ref_mid, out_w, out_b)

    # f32-operand path: tight correctness check against the pure-JAX reference.
    block_f32 = make_progressive_generator_block(conv_w, conv_b, out_w, out_b,
                                                 matmul_dtype=None)
    y_mid = block_f32(x, last=False)                  # (B, C_OUT, 2*L_IN)
    y_last = block_f32(x, last=True)                  # (B, 1,     2*L_IN), fused
    y_unfused = block_f32.out_sequence(block_f32.intermediate_sequence(x))

    # Default bf16-operand path (half HBM DMA bytes + native MXU dtype).
    block_bf16 = make_progressive_generator_block(conv_w, conv_b, out_w, out_b)
    y_mid_bf = block_bf16(x, last=False)
    y_last_bf = block_bf16(x, last=True)

    jax.block_until_ready((y_mid, y_last, y_unfused, y_mid_bf, y_last_bf))

    assert y_mid.shape == (B, C_OUT, 2 * L_IN)
    assert y_last.shape == (B, 1, 2 * L_IN)
    assert y_mid_bf.shape == (B, C_OUT, 2 * L_IN)
    assert y_last_bf.shape == (B, 1, 2 * L_IN)
    assert bool(jnp.all(jnp.isfinite(y_mid_bf))) and bool(jnp.all(jnp.isfinite(y_last_bf)))

    assert bool(jnp.allclose(y_mid, ref_mid, atol=2e-2, rtol=2e-2)), "intermediate mismatch"
    assert bool(jnp.allclose(y_last, ref_last, atol=2e-2, rtol=2e-2)), "last-stage mismatch"
    assert bool(jnp.allclose(y_last, y_unfused, atol=1e-4, rtol=1e-4)), "fused/unfused mismatch"
    assert bool(jnp.allclose(y_mid_bf, ref_mid, atol=1e-1, rtol=1e-1)), "bf16 intermediate drift"
    assert bool(jnp.allclose(y_last_bf, ref_last, atol=1e-1, rtol=1e-1)), "bf16 last-stage drift"

    print("KERNEL_OK")
</pallas_src>

<mosaic_0001>
module attributes {stable_mosaic.version = 11 : i64} {
  func.func @_intermediate_kernel(%arg0: i32, %arg1: memref<8x128xf32, #tpu.memory_space<vmem>>, %arg2: memref<32x8xf32, #tpu.memory_space<vmem>>, %arg3: memref<16x8xf32, #tpu.memory_space<vmem>>, %arg4: memref<16x8xf32, #tpu.memory_space<vmem>>, %arg5: memref<16x1xf32, #tpu.memory_space<vmem>>, %arg6: memref<2x16x128xf32, #tpu.memory_space<vmem>>) attributes {dimension_semantics = [#tpu.dimension_semantics<parallel>], iteration_bounds = array<i64: 1>, scalar_prefetch = 0 : i64, scratch_operands = 0 : i64, tpu.core_type = #tpu.core_type<tc>, window_params = [{transform_indices = @transform_0, window_bounds = array<i64: 8, 128>}, {pipeline_mode = #tpu.pipeline_mode<synchronous>, transform_indices = @transform_1, window_bounds = array<i64: 32, 8>}, {pipeline_mode = #tpu.pipeline_mode<synchronous>, transform_indices = @transform_2, window_bounds = array<i64: 16, 8>}, {pipeline_mode = #tpu.pipeline_mode<synchronous>, transform_indices = @transform_3, window_bounds = array<i64: 16, 8>}, {pipeline_mode = #tpu.pipeline_mode<synchronous>, transform_indices = @transform_4, window_bounds = array<i64: 16, 1>}, {transform_indices = @transform_5, window_bounds = array<i64: 2, 16, 128>}]} {
    %c0 = arith.constant 0 : index
    %c0_0 = arith.constant 0 : index
    %0 = vector.load %arg1[%c0, %c0_0] : memref<8x128xf32, #tpu.memory_space<vmem>>, vector<8x128xf32>
    %1 = tpu.iota {dimensions = array<i32: 1>} : vector<1x128xi32>
    %c64_i32 = arith.constant 64 : i32
    %c0_i32 = arith.constant 0 : i32
    %2 = arith.cmpi eq, %c64_i32, %c0_i32 : i32
    %c1_i32 = arith.constant 1 : i32
    %3 = arith.select %2, %c1_i32, %c64_i32 : i32
    %4 = vector.broadcast %3 : i32 to vector<1x128xi32>
    %5 = arith.remsi %1, %4 : vector<1x128xi32>
    %c0_i32_1 = arith.constant 0 : i32
    %6 = vector.broadcast %c0_i32_1 : i32 to vector<1x128xi32>
    %7 = arith.cmpi ne, %5, %6 : vector<1x128xi32>
    %c0_i32_2 = arith.constant 0 : i32
    %8 = vector.broadcast %c0_i32_2 : i32 to vector<1x128xi32>
    %9 = arith.cmpi slt, %5, %8 : vector<1x128xi32>
    %c0_i32_3 = arith.constant 0 : i32
    %10 = arith.cmpi slt, %3, %c0_i32_3 : i32
    %11 = vector.broadcast %10 : i1 to vector<1x128xi1>
    %12 = vector.broadcast %11 : vector<1x128xi1> to vector<1x128xi1>
    %13 = arith.xori %9, %12 : vector<1x128xi1>
    %14 = arith.andi %13, %7 : vector<1x128xi1>
    %15 = vector.broadcast %3 : i32 to vector<1x128xi32>
    %16 = arith.addi %5, %15 : vector<1x128xi32>
    %17 = arith.select %14, %16, %5 : vector<1x128xi1>, vector<1x128xi32>
    %c0_i32_4 = arith.constant 0 : i32
    %18 = vector.broadcast %c0_i32_4 : i32 to vector<1x128xi32>
    %19 = arith.cmpi eq, %17, %18 : vector<1x128xi32>
    %c1_i32_5 = arith.constant 1 : i32
    %20 = tpu.dynamic_rotate %0 by %c1_i32_5 dim 1 : vector<8x128xf32>, i32 -> vector<8x128xf32>
    %cst = arith.constant 0.000000e+00 : f32
    %21 = vector.shape_cast %19 : vector<1x128xi1> to vector<1x128xi1>
    %22 = vector.broadcast %21 : vector<1x128xi1> to vector<8x128xi1>
    %23 = vector.broadcast %cst : f32 to vector<8x128xf32>
    %24 = arith.select %22, %23, %20 : vector<8x128xi1>, vector<8x128xf32>
    %c63_i32 = arith.constant 63 : i32
    %25 = vector.broadcast %c63_i32 : i32 to vector<1x128xi32>
    %26 = arith.cmpi eq, %17, %25 : vector<1x128xi32>
    %c127_i32 = arith.constant 127 : i32
    %27 = tpu.dynamic_rotate %0 by %c127_i32 dim 1 : vector<8x128xf32>, i32 -> vector<8x128xf32>
    %cst_6 = arith.constant 0.000000e+00 : f32
    %28 = vector.shape_cast %26 : vector<1x128xi1> to vector<1x128xi1>
    %29 = vector.broadcast %28 : vector<1x128xi1> to vector<8x128xi1>
    %30 = vector.broadcast %cst_6 : f32 to vector<8x128xf32>
    %31 = arith.select %29, %30, %27 : vector<8x128xi1>, vector<8x128xf32>
    %c0_7 = arith.constant 0 : index
    %c0_8 = arith.constant 0 : index
    %32 = vector.load %arg2[%c0_7, %c0_8] : memref<32x8xf32, #tpu.memory_space<vmem>>, vector<32x8xf32>
    %cst_9 = arith.constant dense<0.000000e+00> : vector<32x128xf32>
    %33 = tpu.matmul %32, %0, %cst_9 {dimension_numbers = #tpu.dot_dimension_numbers<[1], [0], [0], [1], [0, 0, 1, 1], [], []>} : vector<32x8xf32>, vector<8x128xf32>, vector<32x128xf32> -> vector<32x128xf32>
    %34 = vector.extract_strided_slice %33 {offsets = [0, 0], sizes = [16, 128], strides = [1, 1]} : vector<32x128xf32> to vector<16x128xf32>
    %c0_10 = arith.constant 0 : index
    %c0_11 = arith.constant 0 : index
    %35 = vector.load %arg3[%c0_10, %c0_11] : memref<16x8xf32, #tpu.memory_space<vmem>>, vector<16x8xf32>
    %cst_12 = arith.constant dense<0.000000e+00> : vector<16x128xf32>
    %36 = tpu.matmul %35, %24, %cst_12 {dimension_numbers = #tpu.dot_dimension_numbers<[1], [0], [0], [1], [0, 0, 1, 1], [], []>} : vector<16x8xf32>, vector<8x128xf32>, vector<16x128xf32> -> vector<16x128xf32>
    %37 = arith.addf %34, %36 : vector<16x128xf32>
    %38 = vector.extract_strided_slice %33 {offsets = [16, 0], sizes = [16, 128], strides = [1, 1]} : vector<32x128xf32> to vector<16x128xf32>
    %c0_13 = arith.constant 0 : index
    %c0_14 = arith.constant 0 : index
    %39 = vector.load %arg4[%c0_13, %c0_14] : memref<16x8xf32, #tpu.memory_space<vmem>>, vector<16x8xf32>
    %cst_15 = arith.constant dense<0.000000e+00> : vector<16x128xf32>
    %40 = tpu.matmul %39, %31, %cst_15 {dimension_numbers = #tpu.dot_dimension_numbers<[1], [0], [0], [1], [0, 0, 1, 1], [], []>} : vector<16x8xf32>, vector<8x128xf32>, vector<16x128xf32> -> vector<16x128xf32>
    %41 = arith.addf %38, %40 : vector<16x128xf32>
    %c0_16 = arith.constant 0 : index
    %c0_17 = arith.constant 0 : index
    %42 = vector.load %arg5[%c0_16, %c0_17] : memref<16x1xf32, #tpu.memory_space<vmem>>, vector<16x1xf32>
    %43 = vector.broadcast %42 : vector<16x1xf32> to vector<16x128xf32>
    %44 = arith.addf %37, %43 : vector<16x128xf32>
    %45 = vector.broadcast %42 : vector<16x1xf32> to vector<16x128xf32>
    %46 = arith.addf %41, %45 : vector<16x128xf32>
    %cst_18 = arith.constant 0.000000e+00 : f32
    %47 = vector.broadcast %cst_18 : f32 to vector<16x128xf32>
    %48 = arith.cmpf oge, %44, %47 : vector<16x128xf32>
    %cst_19 = arith.constant 2.000000e-01 : f32
    %49 = vector.broadcast %cst_19 : f32 to vector<16x128xf32>
    %50 = arith.mulf %49, %44 : vector<16x128xf32>
    %51 = arith.select %48, %44, %50 : vector<16x128xi1>, vector<16x128xf32>
    %cst_20 = arith.constant 0.000000e+00 : f32
    %52 = vector.broadcast %cst_20 : f32 to vector<16x128xf32>
    %53 = arith.cmpf oge, %46, %52 : vector<16x128xf32>
    %cst_21 = arith.constant 2.000000e-01 : f32
    %54 = vector.broadcast %cst_21 : f32 to vector<16x128xf32>
    %55 = arith.mulf %54, %46 : vector<16x128xf32>
    %56 = arith.select %53, %46, %55 : vector<16x128xi1>, vector<16x128xf32>
    %57 = arith.mulf %51, %51 : vector<16x128xf32>
    %cst_22 = arith.constant dense<0.000000e+00> : vector<128xf32>
    %58 = vector.multi_reduction <add>, %57, %cst_22 [0] : vector<16x128xf32> to vector<128xf32>
    %59 = vector.shape_cast %58 : vector<128xf32> to vector<1x128xf32>
    %cst_23 = arith.constant 1.600000e+01 : f32
    %60 = vector.broadcast %cst_23 : f32 to vector<1x128xf32>
    %61 = arith.divf %59, %60 : vector<1x128xf32>
    %cst_24 = arith.constant 9.99999993E-9 : f32
    %62 = vector.broadcast %cst_24 : f32 to vector<1x128xf32>
    %63 = arith.addf %61, %62 : vector<1x128xf32>
    %64 = math.rsqrt %63 : vector<1x128xf32>
    %65 = vector.broadcast %64 : vector<1x128xf32> to vector<16x128xf32>
    %66 = arith.mulf %51, %65 : vector<16x128xf32>
    %67 = arith.mulf %56, %56 : vector<16x128xf32>
    %cst_25 = arith.constant dense<0.000000e+00> : vector<128xf32>
    %68 = vector.multi_reduction <add>, %67, %cst_25 [0] : vector<16x128xf32> to vector<128xf32>
    %69 = vector.shape_cast %68 : vector<128xf32> to vector<1x128xf32>
    %cst_26 = arith.constant 1.600000e+01 : f32
    %70 = vector.broadcast %cst_26 : f32 to vector<1x128xf32>
    %71 = arith.divf %69, %70 : vector<1x128xf32>
    %cst_27 = arith.constant 9.99999993E-9 : f32
    %72 = vector.broadcast %cst_27 : f32 to vector<1x128xf32>
    %73 = arith.addf %71, %72 : vector<1x128xf32>
    %74 = math.rsqrt %73 : vector<1x128xf32>
    %75 = vector.broadcast %74 : vector<1x128xf32> to vector<16x128xf32>
    %76 = arith.mulf %56, %75 : vector<16x128xf32>
    %c0_28 = arith.constant 0 : index
    %c0_29 = arith.constant 0 : index
    %c0_30 = arith.constant 0 : index
    %77 = vector.load %arg6[%c0_28, %c0_29, %c0_30] : memref<2x16x128xf32, #tpu.memory_space<vmem>>, vector<1x16x128xf32>
    %78 = vector.shape_cast %77 : vector<1x16x128xf32> to vector<16x128xf32>
    %79 = vector.shape_cast %66 : vector<16x128xf32> to vector<1x16x128xf32>
    tpu.vector_store %arg6[%c0_28, %c0_29, %c0_30], %79 {strides = array<i32>} : memref<2x16x128xf32, #tpu.memory_space<vmem>>, vector<1x16x128xf32>,
    %c1 = arith.constant 1 : index
    %c0_31 = arith.constant 0 : index
    %c0_32 = arith.constant 0 : index
    %80 = vector.load %arg6[%c1, %c0_31, %c0_32] : memref<2x16x128xf32, #tpu.memory_space<vmem>>, vector<1x16x128xf32>
    %81 = vector.shape_cast %80 : vector<1x16x128xf32> to vector<16x128xf32>
    %82 = vector.shape_cast %76 : vector<16x128xf32> to vector<1x16x128xf32>
    tpu.vector_store %arg6[%c1, %c0_31, %c0_32], %82 {strides = array<i32>} : memref<2x16x128xf32, #tpu.memory_space<vmem>>, vector<1x16x128xf32>,
    return
  }
  func.func @transform_0(%arg0: i32) -> (i32, i32) {
    %c0_i32 = arith.constant 0 : i32
    %c0_i32_0 = arith.constant 0 : i32
    return %c0_i32, %arg0 : i32, i32
  }
  func.func @transform_1(%arg0: i32) -> (i32, i32) {
    %c0_i32 = arith.constant 0 : i32
    %c0_i32_0 = arith.constant 0 : i32
    %c0_i32_1 = arith.constant 0 : i32
    return %c0_i32, %c0_i32_0 : i32, i32
  }
  func.func @transform_2(%arg0: i32) -> (i32, i32) {
    %c0_i32 = arith.constant 0 : i32
    %c0_i32_0 = arith.constant 0 : i32
    %c0_i32_1 = arith.constant 0 : i32
    return %c0_i32, %c0_i32_0 : i32, i32
  }
  func.func @transform_3(%arg0: i32) -> (i32, i32) {
    %c0_i32 = arith.constant 0 : i32
    %c0_i32_0 = arith.constant 0 : i32
    %c0_i32_1 = arith.constant 0 : i32
    return %c0_i32, %c0_i32_0 : i32, i32
  }
  func.func @transform_4(%arg0: i32) -> (i32, i32) {
    %c0_i32 = arith.constant 0 : i32
    %c0_i32_0 = arith.constant 0 : i32
    %c0_i32_1 = arith.constant 0 : i32
    return %c0_i32, %c0_i32_0 : i32, i32
  }
  func.func @transform_5(%arg0: i32) -> (i32, i32, i32) {
    %c0_i32 = arith.constant 0 : i32
    %c0_i32_0 = arith.constant 0 : i32
    %c0_i32_1 = arith.constant 0 : i32
    return %c0_i32, %c0_i32_0, %arg0 : i32, i32, i32
  }
}

</mosaic_0001>

<llo_original>
// kernel: tpu_custom_call.1
$region0: #{tpu_custom_call.1}
  #allocation0 [shape = 'u32[]', space=smem, size = 0x4, offset = 0x4, fixed_abs, tag = 'smem constant byte address 0x4 - core index']
  #allocation1 [shape = 'u32[144,128]{1,0:T(1,128)}', space=vmem, size = 0x12000, scoped, tag = 'internal scratch']
  %s0 = inlined_call_operand.vmem [shape: f32[8,128], index: 0, kind: input, shape index: {}]
  %s1 = inlined_call_operand.vmem [shape: f32[32,8], index: 1, kind: input, shape index: {}]
  %s2 = inlined_call_operand.vmem [shape: f32[16,8], index: 2, kind: input, shape index: {}]
  %s3 = inlined_call_operand.vmem [shape: f32[16,8], index: 3, kind: input, shape index: {}]
  %s4 = inlined_call_operand.vmem [shape: f32[16,1], index: 4, kind: input, shape index: {}]
  %s5 = inlined_call_operand.hbm [shape: f32[2,16,128], index: 5, kind: output, shape index: {}]
  %s6 = sld [smem:[#allocation0]]
  $region30: #{tpu_custom_call.1} parent=0
    _
  %s8 = ssub.s32 1, %s6
  %s9 = scalar_select 0, %s8, %s6
  $region1: #{tpu_custom_call.1} parent=0
    #allocation2 [shape = 'u8[16384]{0}', space=vmem, size = 0x4000, scoped, tag = 'output window, operand 0, single buffered']
    #allocation3 [shape = 's32[1]{0}', space=sflag, size = 0x4, scoped, tag = 'scoped memory for tpu_custom_call.1']
    %10 = vsyncpa [#allocation3], 0
    // Predicated region
    $region2: #{tpu_custom_call.1} parent=1 // pred_check
      _
    $region3: #{tpu_custom_call.1} parent=1 // pred_check_branch
      %12 = sbr.rel (0) target = $region5
    $region4: #{tpu_custom_call.1} parent=1 // pred_region
      _
    $region5: #{tpu_custom_call.1} parent=1 // pred_fallthru
      _
    // Predicated region
    $region6: #{tpu_custom_call.1} parent=1 // pred_check
      _
    $region7: #{tpu_custom_call.1} parent=1 // pred_check_branch
      %14 = sbr.rel (0) target = $region9
    $region8: #{tpu_custom_call.1} parent=1 // pred_region
      _
    $region9: #{tpu_custom_call.1} parent=1 // pred_fallthru
      _
    // Predicated region
    $region10: #{tpu_custom_call.1} parent=1 // pred_check
      _
    $region11: #{tpu_custom_call.1} parent=1 // pred_check_branch
      %16 = sbr.rel (0) target = $region13
    $region12: #{tpu_custom_call.1} parent=1 // pred_region
      _
    $region13: #{tpu_custom_call.1} parent=1 // pred_fallthru
      _
    // Predicated region
    $region14: #{tpu_custom_call.1} parent=1 // pred_check
      _
    $region15: #{tpu_custom_call.1} parent=1 // pred_check_branch
      %18 = sbr.rel (0) target = $region17
    $region16: #{tpu_custom_call.1} parent=1 // pred_region
      _
    $region17: #{tpu_custom_call.1} parent=1 // pred_fallthru
      _
    // Predicated region
    $region18: #{tpu_custom_call.1} parent=1 // pred_check
      _
    $region19: #{tpu_custom_call.1} parent=1 // pred_check_branch
      %20 = sbr.rel (0) target = $region21
    $region20: #{tpu_custom_call.1} parent=1 // pred_region
      _
    $region21: #{tpu_custom_call.1} parent=1 // pred_fallthru
      _
    %v21 = vld [vmem:[%s0] sm:$0xff]
    %v22 = vlaneseq
    %v23 = vand.u32 %v22, 127
    %vm24 = vcmp.lt.s32.totalorder %v23, 0
    %v25 = vsub.s32 0, %v23
    %v26 = vsel %vm24, %v25, %v23
    %v27 = vshrl.u32 %v26, 6
    %v28 = vand.u32 %v26, 63
    %v29 = vsub.s32 0, %v28
    %v30 = vsel %vm24, %v29, %v28
    %vm31 = vcmp.ne.s32.totalorder %v30, 0
    %vm32 = vcmp.lt.s32.totalorder %v30, 0
    %vm33 = vmand %vm32, %vm31
    %v34 = vadd.s32 %v30, 64
    %v35 = vsel %vm33, %v34, %v30
    %vm36 = vcmp.eq.s32.totalorder %v35, 0
    %37 = vrot.lane.b32.xlu0 %v21, 1
    %v38 = vpop.permute.xlu0 %37
    %v39 = vsel %vm36, 1, 0
    %vm40 = vcmp.eq.s32.totalorder %v39, 1
    %v41 = vsel %vm40, 0.0, %v38
    %vm42 = vcmp.eq.s32.totalorder %v35, 63
    %43 = vrot.lane.b32.xlu0 %v21, 127
    %v44 = vpop.permute.xlu0 %43
    %v45 = vsel %vm42, 1, 0
    %vm46 = vcmp.eq.s32.totalorder %v45, 1
    %v47 = vsel %vm46, 0.0, %v44
    %v48 = vld [vmem:[%s1] sm:$0xff]
    %v49 = vld [vmem:[%s1 + $0x8] sm:$0xff]
    %v50 = vld [vmem:[%s1 + $0x10] sm:$0xff]
    %v51 = vld [vmem:[%s1 + $0x18] sm:$0xff]
    %vm52 = vcmask 64512
    %v54 = vsel %vm52, %v48, 0
    %v57 = vsel %vm52, %v49, 0
    %v60 = vsel %vm52, %v50, 0
    %v63 = vsel %vm52, %v51, 0
    %65 = vmatprep.subr.mxu0 0.0
    %66 = vmatpush1.msra.mxu0 %v21
    %67 = vmatprep.subr.mxu0 0.0
    %68 = vmatpush1.msra.mxu0 0.0
    %69 = vmatprep.subr.mxu0 0.0
    %70 = vmatpush1.msra.mxu0 0.0
    %71 = vmatprep.subr.mxu0 0.0
    %72 = vmatpush1.msra.mxu0 0.0
    %73 = vmatprep.subr.mxu0 0.0
    %74 = vmatpush1.msra.mxu0 0.0
    %75 = vmatprep.subr.mxu0 0.0
    %76 = vmatpush1.msra.mxu0 0.0
    %77 = vmatprep.subr.mxu0 0.0
    %78 = vmatpush1.msra.mxu0 0.0
    %79 = vmatprep.subr.mxu0 0.0
    %80 = vmatpush1.msra.mxu0 0.0
    %81 = vmatprep.subr.mxu0 0.0
    %82 = vmatpush1.msra.mxu0 0.0
    %83 = vmatprep.subr.mxu0 0.0
    %84 = vmatpush1.msra.mxu0 0.0
    %85 = vmatprep.subr.mxu0 0.0
    %86 = vmatpush1.msra.mxu0 0.0
    %87 = vmatprep.subr.mxu0 0.0
    %88 = vmatpush1.msra.mxu0 0.0
    %89 = vmatprep.subr.mxu0 0.0
    %90 = vmatpush1.msra.mxu0 0.0
    %91 = vmatprep.subr.mxu0 0.0
    %92 = vmatpush1.msra.mxu0 0.0
    %93 = vmatprep.subr.mxu0 0.0
    %94 = vmatpush1.msra.mxu0 0.0
    %95 = vmatprep.subr.mxu0 0.0
    %96 = vmatpush1.msra.mxu0 0.0
    %97 = vmatprep.subr.mxu0 0.0
    %98 = vmatpush1.msra.mxu0 0.0
    %99 = vmatprep.subr.mxu0 0.0
    %100 = vmatpush1.msra.mxu0 0.0
    %101 = vmatprep.subr.mxu0 0.0
    %102 = vmatpush1.msra.mxu0 0.0
    %103 = vmatprep.subr.mxu0 0.0
    %104 = vmatpush1.msra.mxu0 0.0
    %105 = vmatprep.subr.mxu0 0.0
    %106 = vmatpush1.msra.mxu0 0.0
    %107 = vmatprep.subr.mxu0 0.0
    %108 = vmatpush1.msra.mxu0 0.0
    %109 = vmatprep.subr.mxu0 0.0
    %110 = vmatpush1.msra.mxu0 0.0
    %111 = vmatprep.subr.mxu0 0.0
    %112 = vmatpush1.msra.mxu0 0.0
    %113 = vmatprep.subr.mxu0 0.0
    %114 = vmatpush1.msra.mxu0 0.0
    %115 = vmatprep.subr.mxu0 0.0
    %116 = vmatpush1.msra.mxu0 0.0
    %117 = vmatprep.subr.mxu0 0.0
    %118 = vmatpush1.msra.mxu0 0.0
    %119 = vmatprep.subr.mxu0 0.0
    %120 = vmatpush1.msra.mxu0 0.0
    %121 = vmatprep.subr.mxu0 0.0
    %122 = vmatpush1.msra.mxu0 0.0
    %123 = vmatprep.subr.mxu0 0.0
    %124 = vmatpush1.msra.mxu0 0.0
    %125 = vmatprep.subr.mxu0 0.0
    %126 = vmatpush1.msra.mxu0 0.0
    %127 = vmatprep.subr.mxu0 0.0
    %128 = vmatpush1.msra.mxu0 0.0
    %129 = vmatprep.mubr.f32.mxu0 0.0
    %130 = vmatmul.mubr.f32.gmra.mrb[0].mxu0 %v54
    %v131 = vpop.f32.mrb[0].mxu0
    %v132 = vadd.f32 0.0, %v131
    %v133 = vpop.f32.mrb[0].mxu0
    %134 = vmatprep.mubr.f32.mxu0 0.0
    %135 = vmatmul.mubr.f32.gmra.mrb[0].mxu0 %v57
    %v136 = vpop.f32.mrb[0].mxu0
    %v137 = vadd.f32 0.0, %v136
    %v138 = vpop.f32.mrb[0].mxu0
    %139 = vmatprep.mubr.f32.mxu0 0.0
    %140 = vmatmul.mubr.f32.gmra.mrb[0].mxu0 %v60
    %v141 = vpop.f32.mrb[0].mxu0
    %v142 = vadd.f32 0.0, %v141
    %v143 = vpop.f32.mrb[0].mxu0
    %144 = vmatprep.mubr.f32.mxu0 0.0
    %145 = vmatmul.mubr.f32.gmra.mrb[0].mxu0 %v63
    %v146 = vpop.f32.mrb[0].mxu0
    %v147 = vadd.f32 0.0, %v146
    %v148 = vpop.f32.mrb[0].mxu0
    %149 = vdwg.mxu0
    %v150 = vld [vmem:[%s2] sm:$0xff]
    %v151 = vld [vmem:[%s2 + $0x8] sm:$0xff]
    %v153 = vsel %vm52, %v150, 0
    %v156 = vsel %vm52, %v151, 0
    %158 = vmatprep.subr.mxu0 0.0
    %159 = vmatpush1.msra.mxu0 %v41
    %160 = vmatprep.subr.mxu0 0.0
    %161 = vmatpush1.msra.mxu0 0.0
    %162 = vmatprep.subr.mxu0 0.0
    %163 = vmatpush1.msra.mxu0 0.0
    %164 = vmatprep.subr.mxu0 0.0
    %165 = vmatpush1.msra.mxu0 0.0
    %166 = vmatprep.subr.mxu0 0.0
    %167 = vmatpush1.msra.mxu0 0.0
    %168 = vmatprep.subr.mxu0 0.0
    %169 = vmatpush1.msra.mxu0 0.0
    %170 = vmatprep.subr.mxu0 0.0
    %171 = vmatpush1.msra.mxu0 0.0
    %172 = vmatprep.subr.mxu0 0.0
    %173 = vmatpush1.msra.mxu0 0.0
    %174 = vmatprep.subr.mxu0 0.0
    %175 = vmatpush1.msra.mxu0 0.0
    %176 = vmatprep.subr.mxu0 0.0
    %177 = vmatpush1.msra.mxu0 0.0
    %178 = vmatprep.subr.mxu0 0.0
    %179 = vmatpush1.msra.mxu0 0.0
    %180 = vmatprep.subr.mxu0 0.0
    %181 = vmatpush1.msra.mxu0 0.0
    %182 = vmatprep.subr.mxu0 0.0
    %183 = vmatpush1.msra.mxu0 0.0
    %184 = vmatprep.subr.mxu0 0.0
    %185 = vmatpush1.msra.mxu0 0.0
    %186 = vmatprep.subr.mxu0 0.0
    %187 = vmatpush1.msra.mxu0 0.0
    %188 = vmatprep.subr.mxu0 0.0
    %189 = vmatpush1.msra.mxu0 0.0
    %190 = vmatprep.subr.mxu0 0.0
    %191 = vmatpush1.msra.mxu0 0.0
    %192 = vmatprep.subr.mxu0 0.0
    %193 = vmatpush1.msra.mxu0 0.0
    %194 = vmatprep.subr.mxu0 0.0
    %195 = vmatpush1.msra.mxu0 0.0
    %196 = vmatprep.subr.mxu0 0.0
    %197 = vmatpush1.msra.mxu0 0.0
    %198 = vmatprep.subr.mxu0 0.0
    %199 = vmatpush1.msra.mxu0 0.0
    %200 = vmatprep.subr.mxu0 0.0
    %201 = vmatpush1.msra.mxu0 0.0
    %202 = vmatprep.subr.mxu0 0.0
    %203 = vmatpush1.msra.mxu0 0.0
    %204 = vmatprep.subr.mxu0 0.0
    %205 = vmatpush1.msra.mxu0 0.0
    %206 = vmatprep.subr.mxu0 0.0
    %207 = vmatpush1.msra.mxu0 0.0
    %208 = vmatprep.subr.mxu0 0.0
    %209 = vmatpush1.msra.mxu0 0.0
    %210 = vmatprep.subr.mxu0 0.0
    %211 = vmatpush1.msra.mxu0 0.0
    %212 = vmatprep.subr.mxu0 0.0
    %213 = vmatpush1.msra.mxu0 0.0
    %214 = vmatprep.subr.mxu0 0.0
    %215 = vmatpush1.msra.mxu0 0.0
    %216 = vmatprep.subr.mxu0 0.0
    %217 = vmatpush1.msra.mxu0 0.0
    %218 = vmatprep.subr.mxu0 0.0
    %219 = vmatpush1.msra.mxu0 0.0
    %220 = vmatprep.subr.mxu0 0.0
    %221 = vmatpush1.msra.mxu0 0.0
    %222 = vmatprep.mubr.f32.mxu0 0.0
    %223 = vmatmul.mubr.f32.gmra.mrb[0].mxu0 %v153
    %v224 = vpop.f32.mrb[0].mxu0
    %v225 = vadd.f32 0.0, %v224
    %v226 = vpop.f32.mrb[0].mxu0
    %227 = vmatprep.mubr.f32.mxu0 0.0
    %228 = vmatmul.mubr.f32.gmra.mrb[0].mxu0 %v156
    %v229 = vpop.f32.mrb[0].mxu0
    %v230 = vadd.f32 0.0, %v229
    %v231 = vpop.f32.mrb[0].mxu0
    %232 = vdwg.mxu0
    %v233 = vadd.f32 %v132, %v225
    %v234 = vadd.f32 %v137, %v230
    %v235 = vld [vmem:[%s3] sm:$0xff]
    %v236 = vld [vmem:[%s3 + $0x8] sm:$0xff]
    %v238 = vsel %vm52, %v235, 0
    %v241 = vsel %vm52, %v236, 0
    %243 = vmatprep.subr.mxu0 0.0
    %244 = vmatpush1.msra.mxu0 %v47
    %245 = vmatprep.subr.mxu0 0.0
    %246 = vmatpush1.msra.mxu0 0.0
    %247 = vmatprep.subr.mxu0 0.0
    %248 = vmatpush1.msra.mxu0 0.0
    %249 = vmatprep.subr.mxu0 0.0
    %250 = vmatpush1.msra.mxu0 0.0
    %251 = vmatprep.subr.mxu0 0.0
    %252 = vmatpush1.msra.mxu0 0.0
    %253 = vmatprep.subr.mxu0 0.0
    %254 = vmatpush1.msra.mxu0 0.0
    %255 = vmatprep.subr.mxu0 0.0
    %256 = vmatpush1.msra.mxu0 0.0
    %257 = vmatprep.subr.mxu0 0.0
    %258 = vmatpush1.msra.mxu0 0.0
    %259 = vmatprep.subr.mxu0 0.0
    %260 = vmatpush1.msra.mxu0 0.0
    %261 = vmatprep.subr.mxu0 0.0
    %262 = vmatpush1.msra.mxu0 0.0
    %263 = vmatprep.subr.mxu0 0.0
    %264 = vmatpush1.msra.mxu0 0.0
    %265 = vmatprep.subr.mxu0 0.0
    %266 = vmatpush1.msra.mxu0 0.0
    %267 = vmatprep.subr.mxu0 0.0
    %268 = vmatpush1.msra.mxu0 0.0
    %269 = vmatprep.subr.mxu0 0.0
    %270 = vmatpush1.msra.mxu0 0.0
    %271 = vmatprep.subr.mxu0 0.0
    %272 = vmatpush1.msra.mxu0 0.0
    %273 = vmatprep.subr.mxu0 0.0
    %274 = vmatpush1.msra.mxu0 0.0
    %275 = vmatprep.subr.mxu0 0.0
    %276 = vmatpush1.msra.mxu0 0.0
    %277 = vmatprep.subr.mxu0 0.0
    %278 = vmatpush1.msra.mxu0 0.0
    %279 = vmatprep.subr.mxu0 0.0
    %280 = vmatpush1.msra.mxu0 0.0
    %281 = vmatprep.subr.mxu0 0.0
    %282 = vmatpush1.msra.mxu0 0.0
    %283 = vmatprep.subr.mxu0 0.0
    %284 = vmatpush1.msra.mxu0 0.0
    %285 = vmatprep.subr.mxu0 0.0
    %286 = vmatpush1.msra.mxu0 0.0
    %287 = vmatprep.subr.mxu0 0.0
    %288 = vmatpush1.msra.mxu0 0.0
    %289 = vmatprep.subr.mxu0 0.0
    %290 = vmatpush1.msra.mxu0 0.0
    %291 = vmatprep.subr.mxu0 0.0
    %292 = vmatpush1.msra.mxu0 0.0
    %293 = vmatprep.subr.mxu0 0.0
    %294 = vmatpush1.msra.mxu0 0.0
    %295 = vmatprep.subr.mxu0 0.0
    %296 = vmatpush1.msra.mxu0 0.0
    %297 = vmatprep.subr.mxu0 0.0
    %298 = vmatpush1.msra.mxu0 0.0
    %299 = vmatprep.subr.mxu0 0.0
    %300 = vmatpush1.msra.mxu0 0.0
    %301 = vmatprep.subr.mxu0 0.0
    %302 = vmatpush1.msra.mxu0 0.0
    %303 = vmatprep.subr.mxu0 0.0
    %304 = vmatpush1.msra.mxu0 0.0
    %305 = vmatprep.subr.mxu0 0.0
    %306 = vmatpush1.msra.mxu0 0.0
    %307 = vmatprep.mubr.f32.mxu0 0.0
    %308 = vmatmul.mubr.f32.gmra.mrb[0].mxu0 %v238
    %v309 = vpop.f32.mrb[0].mxu0
    %v310 = vadd.f32 0.0, %v309
    %v311 = vpop.f32.mrb[0].mxu0
    %312 = vmatprep.mubr.f32.mxu0 0.0
    %313 = vmatmul.mubr.f32.gmra.mrb[0].mxu0 %v241
    %v314 = vpop.f32.mrb[0].mxu0
    %v315 = vadd.f32 0.0, %v314
    %v316 = vpop.f32.mrb[0].mxu0
    %317 = vdwg.mxu0
    %v318 = vadd.f32 %v142, %v310
    %v319 = vadd.f32 %v147, %v315
    %v320 = vld [vmem:[%s4] sm:$0xff]
    %v321 = vld [vmem:[%s4 + $0x8] sm:$0xff]
    %323 = vset.pattern.permute.xlu0 0
    %324 = vperm.xlu0 %323, %v320
    %v325 = vpop.permute.xlu0 %324
    %328 = vset.pattern.permute.xlu0 0
    %329 = vperm.xlu0 %328, %v321
    %v330 = vpop.permute.xlu0 %329
    %v332 = vadd.f32 %v233, %v325
    %v333 = vadd.f32 %v234, %v330
    %v334 = vadd.f32 %v318, %v325
    %v335 = vadd.f32 %v319, %v330
    %vm336 = vcmp.ge.f32.partialorder %v332, 0.0
    %vm337 = vcmp.ge.f32.partialorder %v333, 0.0
    %v338 = vmul.f32 %v332, 0.2
    %v339 = vmul.f32 %v333, 0.2
    %v340 = vsel %vm336, %v332, %v338
    %v341 = vsel %vm337, %v333, %v339
    %vm342 = vcmp.ge.f32.partialorder %v334, 0.0
    %vm343 = vcmp.ge.f32.partialorder %v335, 0.0
    %v344 = vmul.f32 %v334, 0.2
    %v345 = vmul.f32 %v335, 0.2
    %v346 = vsel %vm342, %v334, %v344
    %v347 = vsel %vm343, %v335, %v345
    %v348 = vmul.f32 %v340, %v340
    %v349 = vmul.f32 %v341, %v341
    %v350 = vadd.f32 %v348, %v349
    %v351 = vrot.slane %v350, 4
    %v352 = vadd.f32 %v350, %v351
    %v353 = vrot.slane %v352, 2
    %v354 = vadd.f32 %v352, %v353
    %v355 = vrot.slane %v354, 1
    %v356 = vadd.f32 %v354, %v355
    %v357 = vrcp.pop 16.0
    %v358 = vmul.f32 %v356, %v357
    %v359 = vadd.f32 %v358, 1e-08
    %v360 = vrsqrt.pop %v359
    %v361 = vmul.f32 %v340, %v360
    %v362 = vmul.f32 %v341, %v360
    %v363 = vmul.f32 %v346, %v346
    %v364 = vmul.f32 %v347, %v347
    %v365 = vadd.f32 %v363, %v364
    %v366 = vrot.slane %v365, 4
    %v367 = vadd.f32 %v365, %v366
    %v368 = vrot.slane %v367, 2
    %v369 = vadd.f32 %v367, %v368
    %v370 = vrot.slane %v369, 1
    %v371 = vadd.f32 %v369, %v370
    %v372 = vmul.f32 %v371, %v357
    %v373 = vadd.f32 %v372, 1e-08
    %v374 = vrsqrt.pop %v373
    %v375 = vmul.f32 %v346, %v374
    %v376 = vmul.f32 %v347, %v374
    %377 = vst [vmem:[#allocation2] sm:$0xff] %v361
    %378 = vst [vmem:[#allocation2 + $0x8] sm:$0xff] %v362
    %s379 = scalar_lea.vmem [#allocation2], 16
    %380 = vst [vmem:[%s379] sm:$0xff] %v375
    %381 = vst [vmem:[%s379 + $0x8] sm:$0xff] %v376
    // Predicated region
    $region22: #{tpu_custom_call.1} parent=1 // pred_check
      _
    $region23: #{tpu_custom_call.1} parent=1 // pred_check_branch
      %383 = sbr.rel (0) target = $region25
    $region24: #{tpu_custom_call.1} parent=1 // pred_region
      %s385 = ssub.s32 512, 512
      %386 = vsyncadd [#allocation3], %s385
      %s387 = sshll.u32 [#allocation2], 4
      %s388 = int_to_ptr.vmem [resolvable:$true] %s387
      %393 = dma.vmem_to_hbm [thread:$0]  %s388, 512, %s5, [#allocation3], 128, 128, 8
    $region25: #{tpu_custom_call.1} parent=1 // pred_fallthru
      _
    // Predicated region
    $region26: #{tpu_custom_call.1} parent=1 // pred_check
      _
    $region27: #{tpu_custom_call.1} parent=1 // pred_check_branch
      %395 = sbr.rel (0) target = $region29
    $region28: #{tpu_custom_call.1} parent=1 // pred_region
      %396 = dma.done [#allocation3], 512
    $region29: #{tpu_custom_call.1} parent=1 // pred_fallthru
      _
    %397 = vsyncpa [#allocation3], 1

</llo_original>
